<compile_context>
chip_gen: v7x
topology: tpu7x:2x2x1
jax: 0.10.0
libtpu: 0.0.40
codegen_flags: <defaults>
</compile_context>

<pallas_src>
import jax
import jax.numpy as jnp
from jax.experimental import pallas as pl
from jax.experimental.pallas import tpu as pltpu

_LANE = 128  # TPU vreg lane width


def _fused_affine_kernel_t(xt_ref, wt_ref, bt_ref, ot_ref):
    """Lane-dense fused affine map: y^T = W^T @ x^T + b^T (batch on lane axis)."""
    ot_ref[...] = (
        jnp.dot(wt_ref[...], xt_ref[...], preferred_element_type=jnp.float32)
        + bt_ref[...]
    ).astype(ot_ref.dtype)


def _collapse_affine_chain(params):
    """Fold a chain of affine layers (no nonlinearity) into one (W, b)."""
    (w, b) = params[0]
    for (wi, bi) in params[1:]:
        b = b @ wi + bi
        w = w @ wi
    return w, b


def _round_up(x, m):
    return ((x + m - 1) // m) * m


def _fused_affine_forward(x, w, b, *, target_tile_bytes=4 << 20):
    """y = x @ W + b, computed lane-dense as y^T = W^T @ x^T + b^T.

    x: (batch, in_dim) float32
    w: (in_dim, out_dim) fused weight, b: (1, out_dim) fused bias.
    """
    batch = x.shape[0]
    in_dim, out_dim = w.shape

    # Tiny-shape bypass: below one lane-width of batch, pallas_call overhead
    # dominates and a plain XLA fusion is strictly cheaper.
    if batch < _LANE:
        return (jnp.dot(x, w, preferred_element_type=jnp.float32) + b).astype(x.dtype)

    # Layout plumbing: present batch on the 128-lane axis.
    xt = x.T                     # (in_dim, batch)
    wt = w.T                     # (out_dim, in_dim) -- tiny, VMEM-resident
    bt = b.reshape(out_dim, 1)   # (out_dim, 1)      -- tiny, VMEM-resident

    # Lane-axis tile: MiB-scale (target ~4 MiB per streamed buffer), multiple of
    # 128, but no larger than half the batch (rounded up) so the grid has at
    # least 2 "parallel" steps for the 2 TensorCores on v7x.
    bytes_per_col = in_dim * x.dtype.itemsize
    tb_cap = max(_LANE, (target_tile_bytes // bytes_per_col) // _LANE * _LANE)
    tb_half = _round_up(pl.cdiv(batch, 2), _LANE)
    tb = int(min(tb_cap, tb_half))

    # cdiv grid with a padded final tile: every output column depends only on
    # its own input column, so garbage in the padded region never leaks into
    # valid columns and the masked writeback discards it.
    grid = (pl.cdiv(batch, tb),)

    # Double-buffered x^T + y^T tiles plus the tiny resident W^T / b^T.
    itemsize = x.dtype.itemsize
    vmem_needed = 2 * (in_dim + out_dim) * tb * itemsize + 4 * in_dim * out_dim
    vmem_limit = int(min(48 * 1024 * 1024, max(1 << 20, 2 * vmem_needed)))

    cost = pl.CostEstimate(
        flops=2 * batch * in_dim * out_dim,
        transcendentals=0,
        bytes_accessed=itemsize * (batch * (in_dim + out_dim)
                                   + in_dim * out_dim + out_dim),
    )

    yt = pl.pallas_call(
        _fused_affine_kernel_t,
        out_shape=jax.ShapeDtypeStruct((out_dim, batch), x.dtype),
        grid=grid,
        in_specs=[
            pl.BlockSpec((in_dim, tb), lambda i: (0, i)),       # streamed x^T cols
            pl.BlockSpec((out_dim, in_dim), lambda i: (0, 0)),  # resident fused W^T
            pl.BlockSpec((out_dim, 1), lambda i: (0, 0)),       # resident fused b^T
        ],
        out_specs=pl.BlockSpec((out_dim, tb), lambda i: (0, i)),
        compiler_params=pltpu.CompilerParams(
            dimension_semantics=("parallel",),
            vmem_limit_bytes=vmem_limit,
        ),
        cost_estimate=cost,
    )(xt, wt, bt)
    return yt.T


def make_module_with_delay_forward(params, *, target_tile_bytes=4 << 20):
    """Build the forward of ModuleWithDelay(NestedWrappedModule).

    Collapses the bias-only Linear chain into a single (W, b) ONCE, then returns
    a closure that runs the fused affine map as a Pallas kernel.
    """
    w, b = _collapse_affine_chain(params)   # (8, 8), (1, 8)

    def forward(x):
        return _fused_affine_forward(x, w, b, target_tile_bytes=target_tile_bytes)

    return forward


def _init_params(key, dims):
    """Deterministic torch.nn.Linear-style init: U(-1/sqrt(fan_in), 1/sqrt(fan_in))."""
    params = []
    for fan_in, fan_out in zip(dims[:-1], dims[1:]):
        key, kw, kb = jax.random.split(key, 3)
        bound = 1.0 / jnp.sqrt(jnp.float32(fan_in))
        # stored directly in (in, out) layout (i.e. torch weight transposed)
        w = jax.random.uniform(kw, (fan_in, fan_out), jnp.float32,
                               minval=-bound, maxval=bound)
        b = jax.random.uniform(kb, (1, fan_out), jnp.float32,
                               minval=-bound, maxval=bound)
        params.append((w, b))
    return params


def _reference_forward(x, params):
    # Per-layer reference (matches the PyTorch Sequential of Linears).
    h = x
    for w, b in params:
        h = h @ w + b
    return h


if __name__ == "__main__":
    key = jax.random.PRNGKey(0)
    key, kx, kx_big, kx_rag = jax.random.split(key, 4)

    # Linear chain 8 -> 4 -> 16 -> 4 -> 8
    params = _init_params(key, [8, 4, 16, 4, 8])
    forward = make_module_with_delay_forward(params)

    # NestedWrappedModule.get_input(): torch.rand(4, 8) -> tiny-shape bypass path.
    x = jax.random.uniform(kx, (4, 8), jnp.float32)
    out = jax.block_until_ready(forward(x))
    ref = _reference_forward(x, params)
    assert out.shape == (4, 8)
    assert jnp.allclose(out, ref, atol=2e-5, rtol=1e-5)

    # Lane-dense Pallas path: batch on the lane axis, 2 "parallel" grid steps.
    x_big = jax.random.uniform(kx_big, (4096, 8), jnp.float32)
    out_big = jax.block_until_ready(forward(x_big))
    ref_big = _reference_forward(x_big, params)
    assert out_big.shape == (4096, 8)
    assert jnp.allclose(out_big, ref_big, atol=2e-5, rtol=1e-5)

    # Non-divisible batch exercises the cdiv + padded-final-tile grid.
    x_rag = jax.random.uniform(kx_rag, (4100, 8), jnp.float32)
    out_rag = jax.block_until_ready(forward(x_rag))
    ref_rag = _reference_forward(x_rag, params)
    assert out_rag.shape == (4100, 8)
    assert jnp.allclose(out_rag, ref_rag, atol=2e-5, rtol=1e-5)

    print("KERNEL_OK")
</pallas_src>

<mosaic_0001>
module attributes {stable_mosaic.version = 11 : i64} {
  func.func @_fused_affine_kernel_t(%arg0: i32, %arg1: memref<8x2048xf32, #tpu.memory_space<vmem>>, %arg2: memref<8x8xf32, #tpu.memory_space<vmem>>, %arg3: memref<8x1xf32, #tpu.memory_space<vmem>>, %arg4: memref<8x2048xf32, #tpu.memory_space<vmem>>) attributes {dimension_semantics = [#tpu.dimension_semantics<parallel>], iteration_bounds = array<i64: 2>, scalar_prefetch = 0 : i64, scratch_operands = 0 : i64, tpu.core_type = #tpu.core_type<tc>, window_params = [{transform_indices = @transform_0, window_bounds = array<i64: 8, 2048>}, {pipeline_mode = #tpu.pipeline_mode<synchronous>, transform_indices = @transform_1, window_bounds = array<i64: 8, 8>}, {pipeline_mode = #tpu.pipeline_mode<synchronous>, transform_indices = @transform_2, window_bounds = array<i64: 8, 1>}, {transform_indices = @transform_3, window_bounds = array<i64: 8, 2048>}]} {
    %c0 = arith.constant 0 : index
    %c0_0 = arith.constant 0 : index
    %0 = vector.load %arg2[%c0, %c0_0] : memref<8x8xf32, #tpu.memory_space<vmem>>, vector<8x8xf32>
    %c0_1 = arith.constant 0 : index
    %c0_2 = arith.constant 0 : index
    %1 = vector.load %arg1[%c0_1, %c0_2] : memref<8x2048xf32, #tpu.memory_space<vmem>>, vector<8x2048xf32>
    %cst = arith.constant dense<0.000000e+00> : vector<8x2048xf32>
    %2 = tpu.matmul %0, %1, %cst {dimension_numbers = #tpu.dot_dimension_numbers<[1], [0], [0], [1], [0, 0, 1, 1], [], []>} : vector<8x8xf32>, vector<8x2048xf32>, vector<8x2048xf32> -> vector<8x2048xf32>
    %c0_3 = arith.constant 0 : index
    %c0_4 = arith.constant 0 : index
    %3 = vector.load %arg3[%c0_3, %c0_4] : memref<8x1xf32, #tpu.memory_space<vmem>>, vector<8x1xf32>
    %4 = vector.broadcast %3 : vector<8x1xf32> to vector<8x2048xf32>
    %5 = arith.addf %2, %4 : vector<8x2048xf32>
    %c0_5 = arith.constant 0 : index
    %c0_6 = arith.constant 0 : index
    %6 = vector.load %arg4[%c0_5, %c0_6] : memref<8x2048xf32, #tpu.memory_space<vmem>>, vector<8x2048xf32>
    tpu.vector_store %arg4[%c0_5, %c0_6], %5 {strides = array<i32>} : memref<8x2048xf32, #tpu.memory_space<vmem>>, vector<8x2048xf32>,
    return
  }
  func.func @transform_0(%arg0: i32) -> (i32, i32) {
    %c0_i32 = arith.constant 0 : i32
    %c0_i32_0 = arith.constant 0 : i32
    return %c0_i32, %arg0 : i32, i32
  }
  func.func @transform_1(%arg0: i32) -> (i32, i32) {
    %c0_i32 = arith.constant 0 : i32
    %c0_i32_0 = arith.constant 0 : i32
    %c0_i32_1 = arith.constant 0 : i32
    return %c0_i32, %c0_i32_0 : i32, i32
  }
  func.func @transform_2(%arg0: i32) -> (i32, i32) {
    %c0_i32 = arith.constant 0 : i32
    %c0_i32_0 = arith.constant 0 : i32
    %c0_i32_1 = arith.constant 0 : i32
    return %c0_i32, %c0_i32_0 : i32, i32
  }
  func.func @transform_3(%arg0: i32) -> (i32, i32) {
    %c0_i32 = arith.constant 0 : i32
    %c0_i32_0 = arith.constant 0 : i32
    return %c0_i32, %arg0 : i32, i32
  }
}

</mosaic_0001>

<llo_original>
// kernel: tpu_custom_call.1
$region0: #{tpu_custom_call.1}
  #allocation0 [shape = 'u32[]', space=smem, size = 0x4, offset = 0x4, fixed_abs, tag = 'smem constant byte address 0x4 - core index']
  #allocation1 [shape = 'u32[144,128]{1,0:T(1,128)}', space=vmem, size = 0x12000, scoped, tag = 'internal scratch']
  %s0 = inlined_call_operand.hbm [shape: f32[8,4096], index: 0, kind: input, shape index: {}]
  %s1 = inlined_call_operand.vmem [shape: f32[8,8], index: 1, kind: input, shape index: {}]
  %s2 = inlined_call_operand.vmem [shape: f32[8,1], index: 2, kind: input, shape index: {}]
  %s3 = inlined_call_operand.hbm [shape: f32[8,4096], index: 3, kind: output, shape index: {}]
  %s4 = sld [smem:[#allocation0]]
  $region49: #{tpu_custom_call.1} parent=0
    _
  %s6 = ssub.s32 1, %s4
  %s7 = scalar_select 0, %s6, %s4
  $region1: #{tpu_custom_call.1} parent=0
    #allocation2 [shape = 'u8[131072]{0}', space=vmem, size = 0x20000, scoped, tag = 'input window, operand 0']
    #allocation3 [shape = 's32[2]{0}', space=sflag, size = 0x8, scoped, tag = 'scoped memory for tpu_custom_call.1']
    #allocation4 [shape = 's32[2]{0}', space=sflag, size = 0x8, scoped, tag = 'scoped memory for tpu_custom_call.1']
    #allocation5 [shape = 'u8[131072]{0}', space=vmem, size = 0x20000, scoped, tag = 'output window, operand 0']
    %8 = vsyncpa [#allocation3], 0
    %s9 = scalar_lea.sflag [#allocation3], 1
    %10 = vsyncpa %s9, 0
    %11 = vsyncpa [#allocation4], 0
    %s12 = scalar_lea.sflag [#allocation4], 1
    %13 = vsyncpa %s12, 0
    loop: start=0, step=1, limit=4
    $region2: #{tpu_custom_call.1} parent=1 // loop_pre_header
      _
    $region3: #{tpu_custom_call.1} parent=1 // loop_header
      %s15 = sphi 0, %s19
      %p16 = scmp.ge.s32.totalorder %s15, 4
      %s25 = sphi 0, %s27
      %s28 = sphi 0, %s25
      %s29 = sphi 0, %s28
      %s45 = sphi 0, %s29
      %s49 = sphi 0, %s49
      %s51 = sphi 0, %s49
      %s52 = sphi 0, %s51
      %s66 = sphi 0, %s52
      %s70 = sphi 0, %s70
      %s72 = sphi 0, %s70
      %s73 = sphi 0, %s72
      %s87 = sphi 0, %s73
      %s93 = sphi 0, %s95
      %s96 = sphi 0, %s93
      %s97 = sphi 0, %s96
      %s113 = sphi 0, %s97
    $region4: #{tpu_custom_call.1} parent=1 // loop_header_branch
      %18 = sbr.rel (%p16) target = $region8
    $region5: #{tpu_custom_call.1} parent=1 // loop_body
      %s20 = ssub.s32 %s15, 1
      %s21 = ssub.s32 %s15, 2
      %s22 = sadd.s32 %s15, 1
      %s23 = ssub.s32 %s15, %s22
      %p24 = scmp.eq.s32.totalorder %s23, 0
      %s26 = sadd.s32 %s25, 1
      %s27 = scalar_select %p24, %s25, %s26
      %p30 = pneg %p24
      %p31 = scmp.eq.s32.totalorder %s15, 1
      %p32 = por %p30, %p31
      %p33 = scmp.ne.s32.totalorder %s25, %s28
      %p34 = scmp.eq.s32.totalorder %s15, 0
      %p35 = por %p33, %p34
      %p36 = scmp.ne.s32.totalorder %s25, %s28
      %p37 = scmp.eq.s32.totalorder %s20, 1
      %p38 = por %p36, %p37
      %p39 = scmp.ne.s32.totalorder %s28, %s29
      %p40 = scmp.eq.s32.totalorder %s20, 0
      %p41 = por %p39, %p40
      %p42 = scmp.ne.s32.totalorder %s28, %s29
      %p43 = scmp.eq.s32.totalorder %s21, 1
      %p44 = por %p42, %p43
      %p46 = scmp.ne.s32.totalorder %s29, %s45
      %p47 = scmp.eq.s32.totalorder %s21, 0
      %p48 = por %p46, %p47
      %s50 = sadd.s32 %s49, 1
      %p53 = scmp.eq.s32.totalorder %s15, 1
      %p54 = scmp.ne.s32.totalorder %s49, %s51
      %p55 = scmp.eq.s32.totalorder %s15, 0
      %p56 = por %p54, %p55
      %p57 = scmp.ne.s32.totalorder %s49, %s51
      %p58 = scmp.eq.s32.totalorder %s20, 1
      %p59 = por %p57, %p58
      %p60 = scmp.ne.s32.totalorder %s51, %s52
      %p61 = scmp.eq.s32.totalorder %s20, 0
      %p62 = por %p60, %p61
      %p63 = scmp.ne.s32.totalorder %s51, %s52
      %p64 = scmp.eq.s32.totalorder %s21, 1
      %p65 = por %p63, %p64
      %p67 = scmp.ne.s32.totalorder %s52, %s66
      %p68 = scmp.eq.s32.totalorder %s21, 0
      %p69 = por %p67, %p68
      %s71 = sadd.s32 %s70, 1
      %p74 = scmp.eq.s32.totalorder %s15, 1
      %p75 = scmp.ne.s32.totalorder %s70, %s72
      %p76 = scmp.eq.s32.totalorder %s15, 0
      %p77 = por %p75, %p76
      %p78 = scmp.ne.s32.totalorder %s70, %s72
      %p79 = scmp.eq.s32.totalorder %s20, 1
      %p80 = por %p78, %p79
      %p81 = scmp.ne.s32.totalorder %s72, %s73
      %p82 = scmp.eq.s32.totalorder %s20, 0
      %p83 = por %p81, %p82
      %p84 = scmp.ne.s32.totalorder %s72, %s73
      %p85 = scmp.eq.s32.totalorder %s21, 1
      %p86 = por %p84, %p85
      %p88 = scmp.ne.s32.totalorder %s73, %s87
      %p89 = scmp.eq.s32.totalorder %s21, 0
      %p90 = por %p88, %p89
      %s91 = ssub.s32 %s15, %s22
      %p92 = scmp.eq.s32.totalorder %s91, 0
      %s94 = sadd.s32 %s93, 1
      %s95 = scalar_select %p92, %s93, %s94
      %p98 = pneg %p92
      %p99 = scmp.eq.s32.totalorder %s15, 1
      %p100 = por %p98, %p99
      %p101 = scmp.ne.s32.totalorder %s93, %s96
      %p102 = scmp.eq.s32.totalorder %s15, 0
      %p103 = por %p101, %p102
      %p104 = scmp.ne.s32.totalorder %s93, %s96
      %p105 = scmp.eq.s32.totalorder %s20, 1
      %p106 = por %p104, %p105
      %p107 = scmp.ne.s32.totalorder %s96, %s97
      %p108 = scmp.eq.s32.totalorder %s20, 0
      %p109 = por %p107, %p108
      %p110 = scmp.ne.s32.totalorder %s96, %s97
      %p111 = scmp.eq.s32.totalorder %s21, 1
      %p112 = por %p110, %p111
      %p114 = scmp.ne.s32.totalorder %s97, %s113
      %p115 = scmp.eq.s32.totalorder %s21, 0
      %p116 = por %p114, %p115
      %p117 = scmp.le.s32.totalorder 1, %s15
      %p118 = scmp.lt.s32.totalorder %s15, 3
      %p119 = pnand %p117, %p118
      %p120 = pneg %p119
      // Predicated region
      $region9: #{tpu_custom_call.1} parent=5 // pred_check
        _
      $region10: #{tpu_custom_call.1} parent=5 // pred_check_branch
        %122 = sbr.rel (%p119) target = $region12
      $region11: #{tpu_custom_call.1} parent=5 // pred_region
        %s123 = ssub.s32 %s15, 1
        // Predicated region
        $region13: #{tpu_custom_call.1} parent=11 // pred_check
          %p124 = pneg %p62
        $region14: #{tpu_custom_call.1} parent=11 // pred_check_branch
          %126 = sbr.rel (%p124) target = $region16
        $region15: #{tpu_custom_call.1} parent=11 // pred_region
          _
        $region16: #{tpu_custom_call.1} parent=11 // pred_fallthru
          _
        // Predicated region
        $region17: #{tpu_custom_call.1} parent=11 // pred_check
          %p127 = pneg %p83
        $region18: #{tpu_custom_call.1} parent=11 // pred_check_branch
          %129 = sbr.rel (%p127) target = $region20
        $region19: #{tpu_custom_call.1} parent=11 // pred_region
          _
        $region20: #{tpu_custom_call.1} parent=11 // pred_fallthru
          _
      $region12: #{tpu_custom_call.1} parent=5 // pred_fallthru
        _
      %p130 = scmp.lt.s32.totalorder %s15, 2
      // Predicated region
      $region21: #{tpu_custom_call.1} parent=5 // pred_check
        %p131 = pneg %p130
      $region22: #{tpu_custom_call.1} parent=5 // pred_check_branch
        %133 = sbr.rel (%p131) target = $region24
      $region23: #{tpu_custom_call.1} parent=5 // pred_region
        // Predicated region
        $region25: #{tpu_custom_call.1} parent=23 // pred_check
          %p134 = pneg %p35
        $region26: #{tpu_custom_call.1} parent=23 // pred_check_branch
          %136 = sbr.rel (%p134) target = $region28
        $region27: #{tpu_custom_call.1} parent=23 // pred_region
          %s137 = sand.u32 %s25, 1
          %s138 = scalar_lea.sflag [#allocation3], %s137
          %s139 = sand.u32 %s25, 1
          %s140 = smul.addr %s139, 128
          %s141 = scalar_lea.vmem [#allocation2], %s140
          %s142 = smul.u32 16, %s15
          %s144 = ssub.s32 2048, 2048
          %145 = vsyncadd %s138, %s144
          %s146 = smul.addr %s142, 128
          %s147 = scalar_lea.hbm %s0, %s146
          %s149 = sshll.u32 %s141, 4
          %s150 = int_to_ptr.vmem [resolvable:$true] %s149
          %152 = dma.hbm_to_vmem [thread:$0]  %s147, 2048, %s150, %s138
        $region28: #{tpu_custom_call.1} parent=23 // pred_fallthru
          _
      $region24: #{tpu_custom_call.1} parent=5 // pred_fallthru
        _
      %p153 = scmp.le.s32.totalorder 1, %s15
      %p154 = scmp.lt.s32.totalorder %s15, 3
      %p155 = pnand %p153, %p154
      %p156 = pneg %p155
      // Predicated region
      $region29: #{tpu_custom_call.1} parent=5 // pred_check
        _
      $region30: #{tpu_custom_call.1} parent=5 // pred_check_branch
        %158 = sbr.rel (%p155) target = $region32
      $region31: #{tpu_custom_call.1} parent=5 // pred_region
        %s159 = ssub.s32 %s15, 1
        %s160 = sand.u32 %s28, 1
        %s161 = scalar_lea.sflag [#allocation3], %s160
        %s162 = sand.u32 %s28, 1
        %s163 = smul.addr %s162, 128
        %s164 = scalar_lea.vmem [#allocation2], %s163
        // Predicated region
        $region33: #{tpu_custom_call.1} parent=31 // pred_check
          %p165 = pneg %p41
        $region34: #{tpu_custom_call.1} parent=31 // pred_check_branch
          %167 = sbr.rel (%p165) target = $region36
        $region35: #{tpu_custom_call.1} parent=31 // pred_region
          %168 = dma.done %s161, 2048
        $region36: #{tpu_custom_call.1} parent=31 // pred_fallthru
          _
        %s169 = sand.u32 %s28, 1
        %s170 = scalar_lea.sflag [#allocation3], %s169
        %s171 = sand.u32 %s28, 1
        %s172 = smul.addr %s171, 128
        %s173 = scalar_lea.vmem [#allocation2], %s172
        %p174 = pneg %p41
        %p175 = pneg %p38
        %p176 = pneg %p62
        %p177 = pneg %p59
        %p178 = pneg %p83
        %p179 = pneg %p80
        %p180 = pneg %p109
        %p181 = pneg %p106
        %s182 = sand.u32 %s96, 1
        %s183 = scalar_lea.sflag [#allocation4], %s182
        %s184 = sand.u32 %s96, 1
        %s185 = smul.addr %s184, 128
        %s186 = scalar_lea.vmem [#allocation5], %s185
        %s187 = smul.u32 16, %s20
        %s188 = smul.u32 16, %s20
        %v189 = vld [vmem:[%s1] sm:$0xff]
        %v190 = vld [vmem:[%s164] sm:$0xff]
        %v191 = vld [vmem:[%s164 + $0x8] sm:$0xff]
        %v192 = vld [vmem:[%s164 + $0x10] sm:$0xff]
        %v193 = vld [vmem:[%s164 + $0x18] sm:$0xff]
        %v194 = vld [vmem:[%s164 + $0x20] sm:$0xff]
        %v195 = vld [vmem:[%s164 + $0x28] sm:$0xff]
        %v196 = vld [vmem:[%s164 + $0x30] sm:$0xff]
        %v197 = vld [vmem:[%s164 + $0x38] sm:$0xff]
        %v198 = vld [vmem:[%s164 + $0x40] sm:$0xff]
        %v199 = vld [vmem:[%s164 + $0x48] sm:$0xff]
        %v200 = vld [vmem:[%s164 + $0x50] sm:$0xff]
        %v201 = vld [vmem:[%s164 + $0x58] sm:$0xff]
        %v202 = vld [vmem:[%s164 + $0x60] sm:$0xff]
        %v203 = vld [vmem:[%s164 + $0x68] sm:$0xff]
        %v204 = vld [vmem:[%s164 + $0x70] sm:$0xff]
        %v205 = vld [vmem:[%s164 + $0x78] sm:$0xff]
        %v206 = vld [vmem:[%s2] sm:$0xff]
        %208 = vset.pattern.permute.xlu0 0
        %209 = vperm.xlu0 %208, %v206
        %v210 = vpop.permute.xlu0 %209
        %vm212 = vcmask 64512
        %v214 = vsel %vm212, %v189, 0
        %216 = vmatprep.subr.mxu0 %v191
        %217 = vmatpush1.msra.mxu0 %v190
        %218 = vmatprep.subr.mxu0 0.0
        %219 = vmatpush1.msra.mxu0 0.0
        %220 = vmatprep.subr.mxu0 0.0
        %221 = vmatpush1.msra.mxu0 0.0
        %222 = vmatprep.subr.mxu0 0.0
        %223 = vmatpush1.msra.mxu0 0.0
        %224 = vmatprep.subr.mxu0 0.0
        %225 = vmatpush1.msra.mxu0 0.0
        %226 = vmatprep.subr.mxu0 0.0
        %227 = vmatpush1.msra.mxu0 0.0
        %228 = vmatprep.subr.mxu0 0.0
        %229 = vmatpush1.msra.mxu0 0.0
        %230 = vmatprep.subr.mxu0 0.0
        %231 = vmatpush1.msra.mxu0 0.0
        %232 = vmatprep.subr.mxu0 0.0
        %233 = vmatpush1.msra.mxu0 0.0
        %234 = vmatprep.subr.mxu0 0.0
        %235 = vmatpush1.msra.mxu0 0.0
        %236 = vmatprep.subr.mxu0 0.0
        %237 = vmatpush1.msra.mxu0 0.0
        %238 = vmatprep.subr.mxu0 0.0
        %239 = vmatpush1.msra.mxu0 0.0
        %240 = vmatprep.subr.mxu0 0.0
        %241 = vmatpush1.msra.mxu0 0.0
        %242 = vmatprep.subr.mxu0 0.0
        %243 = vmatpush1.msra.mxu0 0.0
        %244 = vmatprep.subr.mxu0 0.0
        %245 = vmatpush1.msra.mxu0 0.0
        %246 = vmatprep.subr.mxu0 0.0
        %247 = vmatpush1.msra.mxu0 0.0
        %248 = vmatprep.subr.mxu0 0.0
        %249 = vmatpush1.msra.mxu0 0.0
        %250 = vmatprep.subr.mxu0 0.0
        %251 = vmatpush1.msra.mxu0 0.0
        %252 = vmatprep.subr.mxu0 0.0
        %253 = vmatpush1.msra.mxu0 0.0
        %254 = vmatprep.subr.mxu0 0.0
        %255 = vmatpush1.msra.mxu0 0.0
        %256 = vmatprep.subr.mxu0 0.0
        %257 = vmatpush1.msra.mxu0 0.0
        %258 = vmatprep.subr.mxu0 0.0
        %259 = vmatpush1.msra.mxu0 0.0
        %260 = vmatprep.subr.mxu0 0.0
        %261 = vmatpush1.msra.mxu0 0.0
        %262 = vmatprep.subr.mxu0 0.0
        %263 = vmatpush1.msra.mxu0 0.0
        %264 = vmatprep.subr.mxu0 0.0
        %265 = vmatpush1.msra.mxu0 0.0
        %266 = vmatprep.subr.mxu0 0.0
        %267 = vmatpush1.msra.mxu0 0.0
        %268 = vmatprep.subr.mxu0 0.0
        %269 = vmatpush1.msra.mxu0 0.0
        %270 = vmatprep.subr.mxu0 0.0
        %271 = vmatpush1.msra.mxu0 0.0
        %272 = vmatprep.subr.mxu0 0.0
        %273 = vmatpush1.msra.mxu0 0.0
        %274 = vmatprep.subr.mxu0 0.0
        %275 = vmatpush1.msra.mxu0 0.0
        %276 = vmatprep.subr.mxu0 0.0
        %277 = vmatpush1.msra.mxu0 0.0
        %278 = vmatprep.subr.mxu0 0.0
        %279 = vmatpush1.msra.mxu0 0.0
        %280 = vmatprep.mubr.f32.mxu0 0.0
        %281 = vmatmul.mubr.f32.gmra.mrb[0].mxu0 %v214
        %v282 = vpop.f32.mrb[0].mxu0
        %v283 = vadd.f32 %v210, %v282
        %v284 = vpop.f32.mrb[0].mxu0
        %v285 = vadd.f32 %v210, %v284
        %286 = vdwg.mxu0
        %287 = vmatprep.subr.mxu0 %v193
        %288 = vmatpush1.msra.mxu0 %v192
        %289 = vmatprep.subr.mxu0 0.0
        %290 = vmatpush1.msra.mxu0 0.0
        %291 = vmatprep.subr.mxu0 0.0
        %292 = vmatpush1.msra.mxu0 0.0
        %293 = vmatprep.subr.mxu0 0.0
        %294 = vmatpush1.msra.mxu0 0.0
        %295 = vmatprep.subr.mxu0 0.0
        %296 = vmatpush1.msra.mxu0 0.0
        %297 = vmatprep.subr.mxu0 0.0
        %298 = vmatpush1.msra.mxu0 0.0
        %299 = vmatprep.subr.mxu0 0.0
        %300 = vmatpush1.msra.mxu0 0.0
        %301 = vmatprep.subr.mxu0 0.0
        %302 = vmatpush1.msra.mxu0 0.0
        %303 = vmatprep.subr.mxu0 0.0
        %304 = vmatpush1.msra.mxu0 0.0
        %305 = vmatprep.subr.mxu0 0.0
        %306 = vmatpush1.msra.mxu0 0.0
        %307 = vmatprep.subr.mxu0 0.0
        %308 = vmatpush1.msra.mxu0 0.0
        %309 = vmatprep.subr.mxu0 0.0
        %310 = vmatpush1.msra.mxu0 0.0
        %311 = vmatprep.subr.mxu0 0.0
        %312 = vmatpush1.msra.mxu0 0.0
        %313 = vmatprep.subr.mxu0 0.0
        %314 = vmatpush1.msra.mxu0 0.0
        %315 = vmatprep.subr.mxu0 0.0
        %316 = vmatpush1.msra.mxu0 0.0
        %317 = vmatprep.subr.mxu0 0.0
        %318 = vmatpush1.msra.mxu0 0.0
        %319 = vmatprep.subr.mxu0 0.0
        %320 = vmatpush1.msra.mxu0 0.0
        %321 = vmatprep.subr.mxu0 0.0
        %322 = vmatpush1.msra.mxu0 0.0
        %323 = vmatprep.subr.mxu0 0.0
        %324 = vmatpush1.msra.mxu0 0.0
        %325 = vmatprep.subr.mxu0 0.0
        %326 = vmatpush1.msra.mxu0 0.0
        %327 = vmatprep.subr.mxu0 0.0
        %328 = vmatpush1.msra.mxu0 0.0
        %329 = vmatprep.subr.mxu0 0.0
        %330 = vmatpush1.msra.mxu0 0.0
        %331 = vmatprep.subr.mxu0 0.0
        %332 = vmatpush1.msra.mxu0 0.0
        %333 = vmatprep.subr.mxu0 0.0
        %334 = vmatpush1.msra.mxu0 0.0
        %335 = vmatprep.subr.mxu0 0.0
        %336 = vmatpush1.msra.mxu0 0.0
        %337 = vmatprep.subr.mxu0 0.0
        %338 = vmatpush1.msra.mxu0 0.0
        %339 = vmatprep.subr.mxu0 0.0
        %340 = vmatpush1.msra.mxu0 0.0
        %341 = vmatprep.subr.mxu0 0.0
        %342 = vmatpush1.msra.mxu0 0.0
        %343 = vmatprep.subr.mxu0 0.0
        %344 = vmatpush1.msra.mxu0 0.0
        %345 = vmatprep.subr.mxu0 0.0
        %346 = vmatpush1.msra.mxu0 0.0
        %347 = vmatprep.subr.mxu0 0.0
        %348 = vmatpush1.msra.mxu0 0.0
        %349 = vmatprep.subr.mxu0 0.0
        %350 = vmatpush1.msra.mxu0 0.0
        %351 = vmatprep.mubr.f32.mxu0 0.0
        %352 = vmatmul.mubr.f32.gmra.mrb[0].mxu0 %v214
        %v353 = vpop.f32.mrb[0].mxu0
        %v354 = vadd.f32 %v210, %v353
        %v355 = vpop.f32.mrb[0].mxu0
        %v356 = vadd.f32 %v210, %v355
        %357 = vdwg.mxu0
        %358 = vmatprep.subr.mxu0 %v195
        %359 = vmatpush1.msra.mxu0 %v194
        %360 = vmatprep.subr.mxu0 0.0
        %361 = vmatpush1.msra.mxu0 0.0
        %362 = vmatprep.subr.mxu0 0.0
        %363 = vmatpush1.msra.mxu0 0.0
        %364 = vmatprep.subr.mxu0 0.0
        %365 = vmatpush1.msra.mxu0 0.0
        %366 = vmatprep.subr.mxu0 0.0
        %367 = vmatpush1.msra.mxu0 0.0
        %368 = vmatprep.subr.mxu0 0.0
        %369 = vmatpush1.msra.mxu0 0.0
        %370 = vmatprep.subr.mxu0 0.0
        %371 = vmatpush1.msra.mxu0 0.0
        %372 = vmatprep.subr.mxu0 0.0
        %373 = vmatpush1.msra.mxu0 0.0
        %374 = vmatprep.subr.mxu0 0.0
        %375 = vmatpush1.msra.mxu0 0.0
        %376 = vmatprep.subr.mxu0 0.0
        %377 = vmatpush1.msra.mxu0 0.0
        %378 = vmatprep.subr.mxu0 0.0
        %379 = vmatpush1.msra.mxu0 0.0
        %380 = vmatprep.subr.mxu0 0.0
        %381 = vmatpush1.msra.mxu0 0.0
        %382 = vmatprep.subr.mxu0 0.0
        %383 = vmatpush1.msra.mxu0 0.0
        %384 = vmatprep.subr.mxu0 0.0
        %385 = vmatpush1.msra.mxu0 0.0
        %386 = vmatprep.subr.mxu0 0.0
        %387 = vmatpush1.msra.mxu0 0.0
        %388 = vmatprep.subr.mxu0 0.0
        %389 = vmatpush1.msra.mxu0 0.0
        %390 = vmatprep.subr.mxu0 0.0
        %391 = vmatpush1.msra.mxu0 0.0
        %392 = vmatprep.subr.mxu0 0.0
        %393 = vmatpush1.msra.mxu0 0.0
        %394 = vmatprep.subr.mxu0 0.0
        %395 = vmatpush1.msra.mxu0 0.0
        %396 = vmatprep.subr.mxu0 0.0
        %397 = vmatpush1.msra.mxu0 0.0
        %398 = vmatprep.subr.mxu0 0.0
        %399 = vmatpush1.msra.mxu0 0.0
        %400 = vmatprep.subr.mxu0 0.0
        %401 = vmatpush1.msra.mxu0 0.0
        %402 = vmatprep.subr.mxu0 0.0
        %403 = vmatpush1.msra.mxu0 0.0
        %404 = vmatprep.subr.mxu0 0.0
        %405 = vmatpush1.msra.mxu0 0.0
        %406 = vmatprep.subr.mxu0 0.0
        %407 = vmatpush1.msra.mxu0 0.0
        %408 = vmatprep.subr.mxu0 0.0
        %409 = vmatpush1.msra.mxu0 0.0
        %410 = vmatprep.subr.mxu0 0.0
        %411 = vmatpush1.msra.mxu0 0.0
        %412 = vmatprep.subr.mxu0 0.0
        %413 = vmatpush1.msra.mxu0 0.0
        %414 = vmatprep.subr.mxu0 0.0
        %415 = vmatpush1.msra.mxu0 0.0
        %416 = vmatprep.subr.mxu0 0.0
        %417 = vmatpush1.msra.mxu0 0.0
        %418 = vmatprep.subr.mxu0 0.0
        %419 = vmatpush1.msra.mxu0 0.0
        %420 = vmatprep.subr.mxu0 0.0
        %421 = vmatpush1.msra.mxu0 0.0
        %422 = vmatprep.mubr.f32.mxu0 0.0
        %423 = vmatmul.mubr.f32.gmra.mrb[0].mxu0 %v214
        %v424 = vpop.f32.mrb[0].mxu0
        %v425 = vadd.f32 %v210, %v424
        %v426 = vpop.f32.mrb[0].mxu0
        %v427 = vadd.f32 %v210, %v426
        %428 = vdwg.mxu0
        %429 = vmatprep.subr.mxu0 %v197
        %430 = vmatpush1.msra.mxu0 %v196
        %431 = vmatprep.subr.mxu0 0.0
        %432 = vmatpush1.msra.mxu0 0.0
        %433 = vmatprep.subr.mxu0 0.0
        %434 = vmatpush1.msra.mxu0 0.0
        %435 = vmatprep.subr.mxu0 0.0
        %436 = vmatpush1.msra.mxu0 0.0
        %437 = vmatprep.subr.mxu0 0.0
        %438 = vmatpush1.msra.mxu0 0.0
        %439 = vmatprep.subr.mxu0 0.0
        %440 = vmatpush1.msra.mxu0 0.0
        %441 = vmatprep.subr.mxu0 0.0
        %442 = vmatpush1.msra.mxu0 0.0
        %443 = vmatprep.subr.mxu0 0.0
        %444 = vmatpush1.msra.mxu0 0.0
        %445 = vmatprep.subr.mxu0 0.0
        %446 = vmatpush1.msra.mxu0 0.0
        %447 = vmatprep.subr.mxu0 0.0
        %448 = vmatpush1.msra.mxu0 0.0
        %449 = vmatprep.subr.mxu0 0.0
        %450 = vmatpush1.msra.mxu0 0.0
        %451 = vmatprep.subr.mxu0 0.0
        %452 = vmatpush1.msra.mxu0 0.0
        %453 = vmatprep.subr.mxu0 0.0
        %454 = vmatpush1.msra.mxu0 0.0
        %455 = vmatprep.subr.mxu0 0.0
        %456 = vmatpush1.msra.mxu0 0.0
        %457 = vmatprep.subr.mxu0 0.0
        %458 = vmatpush1.msra.mxu0 0.0
        %459 = vmatprep.subr.mxu0 0.0
        %460 = vmatpush1.msra.mxu0 0.0
        %461 = vmatprep.subr.mxu0 0.0
        %462 = vmatpush1.msra.mxu0 0.0
        %463 = vmatprep.subr.mxu0 0.0
        %464 = vmatpush1.msra.mxu0 0.0
        %465 = vmatprep.subr.mxu0 0.0
        %466 = vmatpush1.msra.mxu0 0.0
        %467 = vmatprep.subr.mxu0 0.0
        %468 = vmatpush1.msra.mxu0 0.0
        %469 = vmatprep.subr.mxu0 0.0
        %470 = vmatpush1.msra.mxu0 0.0
        %471 = vmatprep.subr.mxu0 0.0
        %472 = vmatpush1.msra.mxu0 0.0
        %473 = vmatprep.subr.mxu0 0.0
        %474 = vmatpush1.msra.mxu0 0.0
        %475 = vmatprep.subr.mxu0 0.0
        %476 = vmatpush1.msra.mxu0 0.0
        %477 = vmatprep.subr.mxu0 0.0
        %478 = vmatpush1.msra.mxu0 0.0
        %479 = vmatprep.subr.mxu0 0.0
        %480 = vmatpush1.msra.mxu0 0.0
        %481 = vmatprep.subr.mxu0 0.0
        %482 = vmatpush1.msra.mxu0 0.0
        %483 = vmatprep.subr.mxu0 0.0
        %484 = vmatpush1.msra.mxu0 0.0
        %485 = vmatprep.subr.mxu0 0.0
        %486 = vmatpush1.msra.mxu0 0.0
        %487 = vmatprep.subr.mxu0 0.0
        %488 = vmatpush1.msra.mxu0 0.0
        %489 = vmatprep.subr.mxu0 0.0
        %490 = vmatpush1.msra.mxu0 0.0
        %491 = vmatprep.subr.mxu0 0.0
        %492 = vmatpush1.msra.mxu0 0.0
        %493 = vmatprep.mubr.f32.mxu0 0.0
        %494 = vmatmul.mubr.f32.gmra.mrb[0].mxu0 %v214
        %v495 = vpop.f32.mrb[0].mxu0
        %v496 = vadd.f32 %v210, %v495
        %v497 = vpop.f32.mrb[0].mxu0
        %v498 = vadd.f32 %v210, %v497
        %499 = vdwg.mxu0
        %500 = vmatprep.subr.mxu0 %v199
        %501 = vmatpush1.msra.mxu0 %v198
        %502 = vmatprep.subr.mxu0 0.0
        %503 = vmatpush1.msra.mxu0 0.0
        %504 = vmatprep.subr.mxu0 0.0
        %505 = vmatpush1.msra.mxu0 0.0
        %506 = vmatprep.subr.mxu0 0.0
        %507 = vmatpush1.msra.mxu0 0.0
        %508 = vmatprep.subr.mxu0 0.0
        %509 = vmatpush1.msra.mxu0 0.0
        %510 = vmatprep.subr.mxu0 0.0
        %511 = vmatpush1.msra.mxu0 0.0
        %512 = vmatprep.subr.mxu0 0.0
        %513 = vmatpush1.msra.mxu0 0.0
        %514 = vmatprep.subr.mxu0 0.0
        %515 = vmatpush1.msra.mxu0 0.0
        %516 = vmatprep.subr.mxu0 0.0
        %517 = vmatpush1.msra.mxu0 0.0
        %518 = vmatprep.subr.mxu0 0.0
        %519 = vmatpush1.msra.mxu0 0.0
        %520 = vmatprep.subr.mxu0 0.0
        %521 = vmatpush1.msra.mxu0 0.0
        %522 = vmatprep.subr.mxu0 0.0
        %523 = vmatpush1.msra.mxu0 0.0
        %524 = vmatprep.subr.mxu0 0.0
        %525 = vmatpush1.msra.mxu0 0.0
        %526 = vmatprep.subr.mxu0 0.0
        %527 = vmatpush1.msra.mxu0 0.0
        %528 = vmatprep.subr.mxu0 0.0
        %529 = vmatpush1.msra.mxu0 0.0
        %530 = vmatprep.subr.mxu0 0.0
        %531 = vmatpush1.msra.mxu0 0.0
        %532 = vmatprep.subr.mxu0 0.0
        %533 = vmatpush1.msra.mxu0 0.0
        %534 = vmatprep.subr.mxu0 0.0
        %535 = vmatpush1.msra.mxu0 0.0
        %536 = vmatprep.subr.mxu0 0.0
        %537 = vmatpush1.msra.mxu0 0.0
        %538 = vmatprep.subr.mxu0 0.0
        %539 = vmatpush1.msra.mxu0 0.0
        %540 = vmatprep.subr.mxu0 0.0
        %541 = vmatpush1.msra.mxu0 0.0
        %542 = vmatprep.subr.mxu0 0.0
        %543 = vmatpush1.msra.mxu0 0.0
        %544 = vmatprep.subr.mxu0 0.0
        %545 = vmatpush1.msra.mxu0 0.0
        %546 = vmatprep.subr.mxu0 0.0
        %547 = vmatpush1.msra.mxu0 0.0
        %548 = vmatprep.subr.mxu0 0.0
        %549 = vmatpush1.msra.mxu0 0.0
        %550 = vmatprep.subr.mxu0 0.0
        %551 = vmatpush1.msra.mxu0 0.0
        %552 = vmatprep.subr.mxu0 0.0
        %553 = vmatpush1.msra.mxu0 0.0
        %554 = vmatprep.subr.mxu0 0.0
        %555 = vmatpush1.msra.mxu0 0.0
        %556 = vmatprep.subr.mxu0 0.0
        %557 = vmatpush1.msra.mxu0 0.0
        %558 = vmatprep.subr.mxu0 0.0
        %559 = vmatpush1.msra.mxu0 0.0
        %560 = vmatprep.subr.mxu0 0.0
        %561 = vmatpush1.msra.mxu0 0.0
        %562 = vmatprep.subr.mxu0 0.0
        %563 = vmatpush1.msra.mxu0 0.0
        %564 = vmatprep.mubr.f32.mxu0 0.0
        %565 = vmatmul.mubr.f32.gmra.mrb[0].mxu0 %v214
        %v566 = vpop.f32.mrb[0].mxu0
        %v567 = vadd.f32 %v210, %v566
        %v568 = vpop.f32.mrb[0].mxu0
        %v569 = vadd.f32 %v210, %v568
        %570 = vdwg.mxu0
        %571 = vmatprep.subr.mxu0 %v201
        %572 = vmatpush1.msra.mxu0 %v200
        %573 = vmatprep.subr.mxu0 0.0
        %574 = vmatpush1.msra.mxu0 0.0
        %575 = vmatprep.subr.mxu0 0.0
        %576 = vmatpush1.msra.mxu0 0.0
        %577 = vmatprep.subr.mxu0 0.0
        %578 = vmatpush1.msra.mxu0 0.0
        %579 = vmatprep.subr.mxu0 0.0
        %580 = vmatpush1.msra.mxu0 0.0
        %581 = vmatprep.subr.mxu0 0.0
        %582 = vmatpush1.msra.mxu0 0.0
        %583 = vmatprep.subr.mxu0 0.0
        %584 = vmatpush1.msra.mxu0 0.0
        %585 = vmatprep.subr.mxu0 0.0
        %586 = vmatpush1.msra.mxu0 0.0
        %587 = vmatprep.subr.mxu0 0.0
        %588 = vmatpush1.msra.mxu0 0.0
        %589 = vmatprep.subr.mxu0 0.0
        %590 = vmatpush1.msra.mxu0 0.0
        %591 = vmatprep.subr.mxu0 0.0
        %592 = vmatpush1.msra.mxu0 0.0
        %593 = vmatprep.subr.mxu0 0.0
        %594 = vmatpush1.msra.mxu0 0.0
        %595 = vmatprep.subr.mxu0 0.0
        %596 = vmatpush1.msra.mxu0 0.0
        %597 = vmatprep.subr.mxu0 0.0
        %598 = vmatpush1.msra.mxu0 0.0
        %599 = vmatprep.subr.mxu0 0.0
        %600 = vmatpush1.msra.mxu0 0.0
        %601 = vmatprep.subr.mxu0 0.0
        %602 = vmatpush1.msra.mxu0 0.0
        %603 = vmatprep.subr.mxu0 0.0
        %604 = vmatpush1.msra.mxu0 0.0
        %605 = vmatprep.subr.mxu0 0.0
        %606 = vmatpush1.msra.mxu0 0.0
        %607 = vmatprep.subr.mxu0 0.0
        %608 = vmatpush1.msra.mxu0 0.0
        %609 = vmatprep.subr.mxu0 0.0
        %610 = vmatpush1.msra.mxu0 0.0
        %611 = vmatprep.subr.mxu0 0.0
        %612 = vmatpush1.msra.mxu0 0.0
        %613 = vmatprep.subr.mxu0 0.0
        %614 = vmatpush1.msra.mxu0 0.0
        %615 = vmatprep.subr.mxu0 0.0
        %616 = vmatpush1.msra.mxu0 0.0
        %617 = vmatprep.subr.mxu0 0.0
        %618 = vmatpush1.msra.mxu0 0.0
        %619 = vmatprep.subr.mxu0 0.0
        %620 = vmatpush1.msra.mxu0 0.0
        %621 = vmatprep.subr.mxu0 0.0
        %622 = vmatpush1.msra.mxu0 0.0
        %623 = vmatprep.subr.mxu0 0.0
        %624 = vmatpush1.msra.mxu0 0.0
        %625 = vmatprep.subr.mxu0 0.0
        %626 = vmatpush1.msra.mxu0 0.0
        %627 = vmatprep.subr.mxu0 0.0
        %628 = vmatpush1.msra.mxu0 0.0
        %629 = vmatprep.subr.mxu0 0.0
        %630 = vmatpush1.msra.mxu0 0.0
        %631 = vmatprep.subr.mxu0 0.0
        %632 = vmatpush1.msra.mxu0 0.0
        %633 = vmatprep.subr.mxu0 0.0
        %634 = vmatpush1.msra.mxu0 0.0
        %635 = vmatprep.mubr.f32.mxu0 0.0
        %636 = vmatmul.mubr.f32.gmra.mrb[0].mxu0 %v214
        %v637 = vpop.f32.mrb[0].mxu0
        %v638 = vadd.f32 %v210, %v637
        %v639 = vpop.f32.mrb[0].mxu0
        %v640 = vadd.f32 %v210, %v639
        %641 = vdwg.mxu0
        %642 = vmatprep.subr.mxu0 %v203
        %643 = vmatpush1.msra.mxu0 %v202
        %644 = vmatprep.subr.mxu0 0.0
        %645 = vmatpush1.msra.mxu0 0.0
        %646 = vmatprep.subr.mxu0 0.0
        %647 = vmatpush1.msra.mxu0 0.0
        %648 = vmatprep.subr.mxu0 0.0
        %649 = vmatpush1.msra.mxu0 0.0
        %650 = vmatprep.subr.mxu0 0.0
        %651 = vmatpush1.msra.mxu0 0.0
        %652 = vmatprep.subr.mxu0 0.0
        %653 = vmatpush1.msra.mxu0 0.0
        %654 = vmatprep.subr.mxu0 0.0
        %655 = vmatpush1.msra.mxu0 0.0
        %656 = vmatprep.subr.mxu0 0.0
        %657 = vmatpush1.msra.mxu0 0.0
        %658 = vmatprep.subr.mxu0 0.0
        %659 = vmatpush1.msra.mxu0 0.0
        %660 = vmatprep.subr.mxu0 0.0
        %661 = vmatpush1.msra.mxu0 0.0
        %662 = vmatprep.subr.mxu0 0.0
        %663 = vmatpush1.msra.mxu0 0.0
        %664 = vmatprep.subr.mxu0 0.0
        %665 = vmatpush1.msra.mxu0 0.0
        %666 = vmatprep.subr.mxu0 0.0
        %667 = vmatpush1.msra.mxu0 0.0
        %668 = vmatprep.subr.mxu0 0.0
        %669 = vmatpush1.msra.mxu0 0.0
        %670 = vmatprep.subr.mxu0 0.0
        %671 = vmatpush1.msra.mxu0 0.0
        %672 = vmatprep.subr.mxu0 0.0
        %673 = vmatpush1.msra.mxu0 0.0
        %674 = vmatprep.subr.mxu0 0.0
        %675 = vmatpush1.msra.mxu0 0.0
        %676 = vmatprep.subr.mxu0 0.0
        %677 = vmatpush1.msra.mxu0 0.0
        %678 = vmatprep.subr.mxu0 0.0
        %679 = vmatpush1.msra.mxu0 0.0
        %680 = vmatprep.subr.mxu0 0.0
        %681 = vmatpush1.msra.mxu0 0.0
        %682 = vmatprep.subr.mxu0 0.0
        %683 = vmatpush1.msra.mxu0 0.0
        %684 = vmatprep.subr.mxu0 0.0
        %685 = vmatpush1.msra.mxu0 0.0
        %686 = vmatprep.subr.mxu0 0.0
        %687 = vmatpush1.msra.mxu0 0.0
        %688 = vmatprep.subr.mxu0 0.0
        %689 = vmatpush1.msra.mxu0 0.0
        %690 = vmatprep.subr.mxu0 0.0
        %691 = vmatpush1.msra.mxu0 0.0
        %692 = vmatprep.subr.mxu0 0.0
        %693 = vmatpush1.msra.mxu0 0.0
        %694 = vmatprep.subr.mxu0 0.0
        %695 = vmatpush1.msra.mxu0 0.0
        %696 = vmatprep.subr.mxu0 0.0
        %697 = vmatpush1.msra.mxu0 0.0
        %698 = vmatprep.subr.mxu0 0.0
        %699 = vmatpush1.msra.mxu0 0.0
        %700 = vmatprep.subr.mxu0 0.0
        %701 = vmatpush1.msra.mxu0 0.0
        %702 = vmatprep.subr.mxu0 0.0
        %703 = vmatpush1.msra.mxu0 0.0
        %704 = vmatprep.subr.mxu0 0.0
        %705 = vmatpush1.msra.mxu0 0.0
        %706 = vmatprep.mubr.f32.mxu0 0.0
        %707 = vmatmul.mubr.f32.gmra.mrb[0].mxu0 %v214
        %v708 = vpop.f32.mrb[0].mxu0
        %v709 = vadd.f32 %v210, %v708
        %v710 = vpop.f32.mrb[0].mxu0
        %v711 = vadd.f32 %v210, %v710
        %712 = vdwg.mxu0
        %713 = vmatprep.subr.mxu0 %v205
        %714 = vmatpush1.msra.mxu0 %v204
        %715 = vmatprep.subr.mxu0 0.0
        %716 = vmatpush1.msra.mxu0 0.0
        %717 = vmatprep.subr.mxu0 0.0
        %718 = vmatpush1.msra.mxu0 0.0
        %719 = vmatprep.subr.mxu0 0.0
        %720 = vmatpush1.msra.mxu0 0.0
        %721 = vmatprep.subr.mxu0 0.0
        %722 = vmatpush1.msra.mxu0 0.0
        %723 = vmatprep.subr.mxu0 0.0
        %724 = vmatpush1.msra.mxu0 0.0
        %725 = vmatprep.subr.mxu0 0.0
        %726 = vmatpush1.msra.mxu0 0.0
        %727 = vmatprep.subr.mxu0 0.0
        %728 = vmatpush1.msra.mxu0 0.0
        %729 = vmatprep.subr.mxu0 0.0
        %730 = vmatpush1.msra.mxu0 0.0
        %731 = vmatprep.subr.mxu0 0.0
        %732 = vmatpush1.msra.mxu0 0.0
        %733 = vmatprep.subr.mxu0 0.0
        %734 = vmatpush1.msra.mxu0 0.0
        %735 = vmatprep.subr.mxu0 0.0
        %736 = vmatpush1.msra.mxu0 0.0
        %737 = vmatprep.subr.mxu0 0.0
        %738 = vmatpush1.msra.mxu0 0.0
        %739 = vmatprep.subr.mxu0 0.0
        %740 = vmatpush1.msra.mxu0 0.0
        %741 = vmatprep.subr.mxu0 0.0
        %742 = vmatpush1.msra.mxu0 0.0
        %743 = vmatprep.subr.mxu0 0.0
        %744 = vmatpush1.msra.mxu0 0.0
        %745 = vmatprep.subr.mxu0 0.0
        %746 = vmatpush1.msra.mxu0 0.0
        %747 = vmatprep.subr.mxu0 0.0
        %748 = vmatpush1.msra.mxu0 0.0
        %749 = vmatprep.subr.mxu0 0.0
        %750 = vmatpush1.msra.mxu0 0.0
        %751 = vmatprep.subr.mxu0 0.0
        %752 = vmatpush1.msra.mxu0 0.0
        %753 = vmatprep.subr.mxu0 0.0
        %754 = vmatpush1.msra.mxu0 0.0
        %755 = vmatprep.subr.mxu0 0.0
        %756 = vmatpush1.msra.mxu0 0.0
        %757 = vmatprep.subr.mxu0 0.0
        %758 = vmatpush1.msra.mxu0 0.0
        %759 = vmatprep.subr.mxu0 0.0
        %760 = vmatpush1.msra.mxu0 0.0
        %761 = vmatprep.subr.mxu0 0.0
        %762 = vmatpush1.msra.mxu0 0.0
        %763 = vmatprep.subr.mxu0 0.0
        %764 = vmatpush1.msra.mxu0 0.0
        %765 = vmatprep.subr.mxu0 0.0
        %766 = vmatpush1.msra.mxu0 0.0
        %767 = vmatprep.subr.mxu0 0.0
        %768 = vmatpush1.msra.mxu0 0.0
        %769 = vmatprep.subr.mxu0 0.0
        %770 = vmatpush1.msra.mxu0 0.0
        %771 = vmatprep.subr.mxu0 0.0
        %772 = vmatpush1.msra.mxu0 0.0
        %773 = vmatprep.subr.mxu0 0.0
        %774 = vmatpush1.msra.mxu0 0.0
        %775 = vmatprep.subr.mxu0 0.0
        %776 = vmatpush1.msra.mxu0 0.0
        %777 = vmatprep.mubr.f32.mxu0 0.0
        %778 = vmatmul.mubr.f32.gmra.mrb[0].mxu0 %v214
        %v779 = vpop.f32.mrb[0].mxu0
        %v780 = vadd.f32 %v210, %v779
        %v781 = vpop.f32.mrb[0].mxu0
        %v782 = vadd.f32 %v210, %v781
        %783 = vdwg.mxu0
        %784 = vst [vmem:[%s186] sm:$0xff] %v283
        %785 = vst [vmem:[%s186 + $0x8] sm:$0xff] %v285
        %786 = vst [vmem:[%s186 + $0x10] sm:$0xff] %v354
        %787 = vst [vmem:[%s186 + $0x18] sm:$0xff] %v356
        %788 = vst [vmem:[%s186 + $0x20] sm:$0xff] %v425
        %789 = vst [vmem:[%s186 + $0x28] sm:$0xff] %v427
        %790 = vst [vmem:[%s186 + $0x30] sm:$0xff] %v496
        %791 = vst [vmem:[%s186 + $0x38] sm:$0xff] %v498
        %792 = vst [vmem:[%s186 + $0x40] sm:$0xff] %v567
        %793 = vst [vmem:[%s186 + $0x48] sm:$0xff] %v569
        %794 = vst [vmem:[%s186 + $0x50] sm:$0xff] %v638
        %795 = vst [vmem:[%s186 + $0x58] sm:$0xff] %v640
        %796 = vst [vmem:[%s186 + $0x60] sm:$0xff] %v709
        %797 = vst [vmem:[%s186 + $0x68] sm:$0xff] %v711
        %798 = vst [vmem:[%s186 + $0x70] sm:$0xff] %v780
        %799 = vst [vmem:[%s186 + $0x78] sm:$0xff] %v782
        %s800 = sand.u32 %s96, 1
        %s801 = scalar_lea.sflag [#allocation4], %s800
        %s802 = sand.u32 %s96, 1
        %s803 = smul.addr %s802, 128
        %s804 = scalar_lea.vmem [#allocation5], %s803
        // Predicated region
        $region37: #{tpu_custom_call.1} parent=31 // pred_check
          %p805 = pneg %p106
        $region38: #{tpu_custom_call.1} parent=31 // pred_check_branch
          %807 = sbr.rel (%p805) target = $region40
        $region39: #{tpu_custom_call.1} parent=31 // pred_region
          %s808 = smul.u32 16, %s20
          %s810 = ssub.s32 2048, 2048
          %811 = vsyncadd %s801, %s810
          %s812 = smul.addr %s808, 128
          %s813 = scalar_lea.hbm %s3, %s812
          %s815 = sshll.u32 %s804, 4
          %s816 = int_to_ptr.vmem [resolvable:$true] %s815
          %818 = dma.vmem_to_hbm [thread:$0]  %s816, 2048, %s813, %s801
        $region40: #{tpu_custom_call.1} parent=31 // pred_fallthru
          _
      $region32: #{tpu_custom_call.1} parent=5 // pred_fallthru
        _
      %p819 = scmp.le.s32.totalorder 2, %s15
      // Predicated region
      $region41: #{tpu_custom_call.1} parent=5 // pred_check
        %p820 = pneg %p819
      $region42: #{tpu_custom_call.1} parent=5 // pred_check_branch
        %822 = sbr.rel (%p820) target = $region44
      $region43: #{tpu_custom_call.1} parent=5 // pred_region
        %s823 = ssub.s32 %s15, 2
        // Predicated region
        $region45: #{tpu_custom_call.1} parent=43 // pred_check
          %p824 = pneg %p112
        $region46: #{tpu_custom_call.1} parent=43 // pred_check_branch
          %826 = sbr.rel (%p824) target = $region48
        $region47: #{tpu_custom_call.1} parent=43 // pred_region
          %s827 = sand.u32 %s97, 1
          %s828 = scalar_lea.sflag [#allocation4], %s827
          %s829 = sand.u32 %s97, 1
          %s830 = smul.addr %s829, 128
          %s831 = scalar_lea.vmem [#allocation5], %s830
          %832 = dma.done %s828, 2048
        $region48: #{tpu_custom_call.1} parent=43 // pred_fallthru
          _
      $region44: #{tpu_custom_call.1} parent=5 // pred_fallthru
        _
    $region6: #{tpu_custom_call.1} parent=1 // loop_footer
      %s19 = sadd.s32 1, %s15
    $region7: #{tpu_custom_call.1} parent=1 // loop_footer_branch
      %14 = sbr.rel target = $region3
    $region8: #{tpu_custom_call.1} parent=1 // loop_exit
      _
    %833 = vsyncpa [#allocation3], 1
    %s834 = scalar_lea.sflag [#allocation3], 1
    %835 = vsyncpa %s834, 1
    %836 = vsyncpa [#allocation4], 1
    %s837 = scalar_lea.sflag [#allocation4], 1
    %838 = vsyncpa %s837, 1

</llo_original>
